<compile_context>
chip_gen: v6e
topology: v6e:2x2x1
jax: 0.10.0
libtpu: 0.0.40
codegen_flags: <defaults>
</compile_context>

<pallas_src>
import functools

import jax
import jax.numpy as jnp
import numpy as np
from jax.experimental import pallas as pl
from jax.experimental.pallas import tpu as pltpu

# --- module config (small, synthetic) ---
DIM = 32
EXPANSION = 2
INNER = DIM * EXPANSION            # 64
KSIZE = 31
PAD_L = KSIZE // 2                 # 15
PAD_R = PAD_L - (KSIZE + 1) % 2    # 15  (non-causal "same" padding)
EPS = 1e-5

B = 2
N = 16


# ----------------------------------------------------------------------------
# fused kernel (one tile = seq_per_tile whole sequences, rows = seq_per_tile*N)
# ----------------------------------------------------------------------------
def _conformer_conv_kernel(x_ref, w1_ref, b1_ref, dw_ref, db_ref, w2_ref, b2_ref,
                           o_ref, *, seq_len, seq_per_tile, use_bf16):
    rows = x_ref.shape[0]                                    # seq_per_tile * N (matmul M)
    ksize, inner = dw_ref.shape
    pad_l = ksize // 2
    pad_r = pad_l - (ksize + 1) % 2

    x = x_ref[...].astype(jnp.float32)                       # (rows, DIM)

    # --- nn.LayerNorm(dim): biased variance, eps inside rsqrt.
    #     (affine gamma/beta already folded into w1/b1 in the wrapper) ---
    mean = jnp.mean(x, axis=-1, keepdims=True)
    var = jnp.mean((x - mean) ** 2, axis=-1, keepdims=True)
    xn = (x - mean) * jax.lax.rsqrt(var + EPS)

    # --- Conv1d(dim -> 2*inner, k=1): pointwise => one MXU matmul over the tile ---
    lhs1 = xn.astype(jnp.bfloat16) if use_bf16 else xn
    h = jnp.dot(lhs1, w1_ref[...], preferred_element_type=jnp.float32) + b1_ref[...]

    # --- GLU along channels (first inner = out, second inner = gate) ---
    g = h[:, :inner] * jax.nn.sigmoid(h[:, inner:])          # (rows, INNER), f32

    # --- DepthWiseConv1d(inner, inner, k=31, padding=(15,15)) ---
    # One zero-padded copy of g handles the "same" padding at the tile edges; each
    # tap is then a *static* sublane slice of that copy.  When a tile holds more
    # than one sequence, a single static-threshold compare + select per tap zeroes
    # the rows that would otherwise leak across a sequence boundary.
    dw = dw_ref[...]                                         # (K, INNER) f32 tap weights
    gp = jnp.concatenate(
        [jnp.zeros((pad_l, inner), jnp.float32), g,
         jnp.zeros((pad_r, inner), jnp.float32)], axis=0)    # (rows + K - 1, INNER)

    if seq_per_tile > 1:
        n_in = jax.lax.broadcasted_iota(jnp.int32, (rows, 1), 0) % seq_len
    else:
        n_in = None                                          # zero pad alone is sufficient

    acc = jnp.zeros((rows, inner), jnp.float32) + db_ref[...]
    for k in range(ksize):                                   # unrolled taps (static)
        s = k - pad_l                                        # source offset of this tap
        tap = gp[k:k + rows, :]                              # static slice: tap[r] = g[r + s]
        if n_in is not None and s != 0:
            if s > 0:
                tap = jnp.where(n_in < seq_len - s, tap, 0.0)
            else:
                tap = jnp.where(n_in >= -s, tap, 0.0)
        acc = acc + tap * dw[k]

    # --- Swish ---
    sact = acc * jax.nn.sigmoid(acc)

    # --- Conv1d(inner -> dim, k=1); Dropout(p=0.0) is the identity ---
    lhs2 = sact.astype(jnp.bfloat16) if use_bf16 else sact
    y = jnp.dot(lhs2, w2_ref[...], preferred_element_type=jnp.float32) + b2_ref[...]
    o_ref[...] = y.astype(o_ref.dtype)


# ----------------------------------------------------------------------------
# wrapper
# ----------------------------------------------------------------------------
def conformer_conv_module(x, params, *, seq_per_tile=1, use_bf16_matmul=True):
    """x: (B, N, dim).  Tiles the flattened (B*N, dim) rows into whole-sequence blocks."""
    gamma, beta, w1, b1, dw, db, w2, b2 = params
    Bb, Nn, D = x.shape
    assert Bb % seq_per_tile == 0, "tile must hold whole sequences"
    rows = seq_per_tile * Nn                                 # rows per tile (multiple of N)
    num_tiles = (Bb * Nn) // rows

    # Fold the LayerNorm affine into the first 1x1 conv (exact):
    #   (xn*gamma + beta) @ w1 + b1 == xn @ (diag(gamma) @ w1) + (beta @ w1 + b1)
    w1f = gamma.reshape(D, 1) * w1                           # (D, 2*INNER)
    b1f = beta @ w1 + b1                                     # (1, 2*INNER), f32

    mm_dtype = jnp.bfloat16 if use_bf16_matmul else jnp.float32
    w1f = w1f.astype(mm_dtype)                               # MXU operands in bf16 (prod path)
    w2c = w2.astype(mm_dtype)

    x2 = x.reshape(Bb * Nn, D)                               # fold batch into matmul-M rows

    kernel = functools.partial(_conformer_conv_kernel, seq_len=Nn,
                               seq_per_tile=seq_per_tile, use_bf16=use_bf16_matmul)

    def full_spec(shape):
        zeros = (0,) * len(shape)
        return pl.BlockSpec(shape, lambda i: zeros)

    row_spec = pl.BlockSpec((rows, D), lambda i: (i, 0))
    operands = (x2, w1f, b1f, dw, db, w2c, b2)

    out = pl.pallas_call(
        kernel,
        out_shape=jax.ShapeDtypeStruct((Bb * Nn, D), x.dtype),
        grid=(num_tiles,),
        in_specs=[row_spec] + [full_spec(op.shape) for op in operands[1:]],
        out_specs=pl.BlockSpec((rows, D), lambda i: (i, 0)),
        compiler_params=pltpu.CompilerParams(dimension_semantics=("parallel",)),
    )(*operands)
    return out.reshape(Bb, Nn, D)


# ----------------------------------------------------------------------------
# params / reference
# ----------------------------------------------------------------------------
def make_params(key):
    k1, k2, k3, k4, k5, k6, k7, k8 = jax.random.split(key, 8)
    # Non-trivial LayerNorm affine so the wrapper-side fold is actually exercised.
    gamma = 1.0 + 0.1 * jax.random.normal(k7, (1, DIM), jnp.float32)
    beta = 0.1 * jax.random.normal(k8, (1, DIM), jnp.float32)
    # Conv1d(dim, 2*inner, 1): folded to (DIM, 2*INNER)
    w1 = 0.1 * jax.random.normal(k1, (DIM, 2 * INNER), jnp.float32)
    b1 = 0.1 * jax.random.normal(k2, (1, 2 * INNER), jnp.float32)
    # DepthWiseConv1d weight (inner, 1, K) folded to (K, INNER)
    dw = 0.1 * jax.random.normal(k3, (KSIZE, INNER), jnp.float32)
    db = 0.1 * jax.random.normal(k4, (1, INNER), jnp.float32)
    # Conv1d(inner, dim, 1): folded to (INNER, DIM)
    w2 = 0.1 * jax.random.normal(k5, (INNER, DIM), jnp.float32)
    b2 = 0.1 * jax.random.normal(k6, (1, DIM), jnp.float32)
    return (gamma, beta, w1, b1, dw, db, w2, b2)


def reference(x, params):
    gamma, beta, w1, b1, dw, db, w2, b2 = params
    mean = jnp.mean(x, axis=-1, keepdims=True)
    var = jnp.mean((x - mean) ** 2, axis=-1, keepdims=True)
    xn = (x - mean) / jnp.sqrt(var + EPS) * gamma[0] + beta[0]
    h = xn @ w1 + b1[0]
    g = h[..., :INNER] * jax.nn.sigmoid(h[..., INNER:])
    gp = jnp.pad(g, ((0, 0), (PAD_L, PAD_R), (0, 0)))
    acc = jnp.zeros((x.shape[0], x.shape[1], INNER), jnp.float32) + db[0]
    for k in range(KSIZE):
        acc = acc + gp[:, k:k + x.shape[1], :] * dw[k]
    s = acc * jax.nn.sigmoid(acc)
    return s @ w2 + b2[0]


if __name__ == "__main__":
    key = jax.random.PRNGKey(0)
    kx, kp = jax.random.split(key)
    x = jax.random.normal(kx, (B, N, DIM), jnp.float32)      # (batch, seq, dim)
    params = make_params(kp)

    ref = jax.block_until_ready(reference(x, params))

    # 1) exact-math path (f32 MXU operands): tight check of the fused kernel logic
    out_f32 = jax.block_until_ready(
        conformer_conv_module(x, params, seq_per_tile=1, use_bf16_matmul=False))
    assert out_f32.shape == (B, N, DIM)
    np.testing.assert_allclose(np.asarray(out_f32), np.asarray(ref), rtol=1e-4, atol=1e-4)

    # 2) multi-sequence-per-tile path: exercises the in-tile sequence-boundary masks
    out_multi = jax.block_until_ready(
        conformer_conv_module(x, params, seq_per_tile=2, use_bf16_matmul=False))
    np.testing.assert_allclose(np.asarray(out_multi), np.asarray(ref), rtol=1e-4, atol=1e-4)

    # 3) recommended production path: bf16 MXU operands, f32 accumulation
    out_bf16 = jax.block_until_ready(
        conformer_conv_module(x, params, seq_per_tile=1, use_bf16_matmul=True))
    np.testing.assert_allclose(np.asarray(out_bf16), np.asarray(ref), rtol=2e-2, atol=2e-2)

    print("KERNEL_OK")
</pallas_src>

<mosaic_0001>
module attributes {stable_mosaic.version = 11 : i64} {
  func.func @_conformer_conv_kernel(%arg0: i32, %arg1: memref<16x32xf32, #tpu.memory_space<vmem>>, %arg2: memref<32x128xf32, #tpu.memory_space<vmem>>, %arg3: memref<1x128xf32, #tpu.memory_space<vmem>>, %arg4: memref<31x64xf32, #tpu.memory_space<vmem>>, %arg5: memref<1x64xf32, #tpu.memory_space<vmem>>, %arg6: memref<64x32xf32, #tpu.memory_space<vmem>>, %arg7: memref<1x32xf32, #tpu.memory_space<vmem>>, %arg8: memref<16x32xf32, #tpu.memory_space<vmem>>) attributes {dimension_semantics = [#tpu.dimension_semantics<parallel>], iteration_bounds = array<i64: 2>, scalar_prefetch = 0 : i64, scratch_operands = 0 : i64, tpu.core_type = #tpu.core_type<tc>, window_params = [{transform_indices = @transform_0, window_bounds = array<i64: 16, 32>}, {pipeline_mode = #tpu.pipeline_mode<synchronous>, transform_indices = @transform_1, window_bounds = array<i64: 32, 128>}, {pipeline_mode = #tpu.pipeline_mode<synchronous>, transform_indices = @transform_2, window_bounds = array<i64: 1, 128>}, {pipeline_mode = #tpu.pipeline_mode<synchronous>, transform_indices = @transform_3, window_bounds = array<i64: 31, 64>}, {pipeline_mode = #tpu.pipeline_mode<synchronous>, transform_indices = @transform_4, window_bounds = array<i64: 1, 64>}, {pipeline_mode = #tpu.pipeline_mode<synchronous>, transform_indices = @transform_5, window_bounds = array<i64: 64, 32>}, {pipeline_mode = #tpu.pipeline_mode<synchronous>, transform_indices = @transform_6, window_bounds = array<i64: 1, 32>}, {transform_indices = @transform_7, window_bounds = array<i64: 16, 32>}]} {
    %c0 = arith.constant 0 : index
    %c0_0 = arith.constant 0 : index
    %0 = vector.load %arg1[%c0, %c0_0] : memref<16x32xf32, #tpu.memory_space<vmem>>, vector<16x32xf32>
    %cst = arith.constant dense<0.000000e+00> : vector<16xf32>
    %1 = vector.multi_reduction <add>, %0, %cst [1] : vector<16x32xf32> to vector<16xf32>
    %2 = vector.shape_cast %1 : vector<16xf32> to vector<16x1xf32>
    %cst_1 = arith.constant 3.200000e+01 : f32
    %3 = vector.broadcast %cst_1 : f32 to vector<16x1xf32>
    %4 = arith.divf %2, %3 : vector<16x1xf32>
    %5 = vector.broadcast %4 : vector<16x1xf32> to vector<16x32xf32>
    %6 = arith.subf %0, %5 : vector<16x32xf32>
    %7 = arith.mulf %6, %6 : vector<16x32xf32>
    %cst_2 = arith.constant dense<0.000000e+00> : vector<16xf32>
    %8 = vector.multi_reduction <add>, %7, %cst_2 [1] : vector<16x32xf32> to vector<16xf32>
    %9 = vector.shape_cast %8 : vector<16xf32> to vector<16x1xf32>
    %cst_3 = arith.constant 3.200000e+01 : f32
    %10 = vector.broadcast %cst_3 : f32 to vector<16x1xf32>
    %11 = arith.divf %9, %10 : vector<16x1xf32>
    %12 = vector.broadcast %4 : vector<16x1xf32> to vector<16x32xf32>
    %13 = arith.subf %0, %12 : vector<16x32xf32>
    %cst_4 = arith.constant 9.99999974E-6 : f32
    %14 = vector.broadcast %cst_4 : f32 to vector<16x1xf32>
    %15 = arith.addf %11, %14 : vector<16x1xf32>
    %16 = math.rsqrt %15 : vector<16x1xf32>
    %17 = vector.broadcast %16 : vector<16x1xf32> to vector<16x32xf32>
    %18 = arith.mulf %13, %17 : vector<16x32xf32>
    %c0_5 = arith.constant 0 : index
    %c0_6 = arith.constant 0 : index
    %19 = vector.load %arg2[%c0_5, %c0_6] : memref<32x128xf32, #tpu.memory_space<vmem>>, vector<32x128xf32>
    %cst_7 = arith.constant dense<0.000000e+00> : vector<16x128xf32>
    %20 = tpu.matmul %18, %19, %cst_7 {dimension_numbers = #tpu.dot_dimension_numbers<[1], [0], [0], [1], [0, 0, 1, 1], [], []>} : vector<16x32xf32>, vector<32x128xf32>, vector<16x128xf32> -> vector<16x128xf32>
    %c0_8 = arith.constant 0 : index
    %c0_9 = arith.constant 0 : index
    %21 = vector.load %arg3[%c0_8, %c0_9] : memref<1x128xf32, #tpu.memory_space<vmem>>, vector<1x128xf32>
    %22 = vector.broadcast %21 : vector<1x128xf32> to vector<16x128xf32>
    %23 = arith.addf %20, %22 : vector<16x128xf32>
    %24 = vector.extract_strided_slice %23 {offsets = [0, 0], sizes = [16, 64], strides = [1, 1]} : vector<16x128xf32> to vector<16x64xf32>
    %25 = vector.extract_strided_slice %23 {offsets = [0, 64], sizes = [16, 64], strides = [1, 1]} : vector<16x128xf32> to vector<16x64xf32>
    %26 = arith.negf %25 : vector<16x64xf32>
    %27 = math.exp %26 : vector<16x64xf32>
    %cst_10 = arith.constant 1.000000e+00 : f32
    %28 = vector.broadcast %cst_10 : f32 to vector<16x64xf32>
    %29 = arith.addf %28, %27 : vector<16x64xf32>
    %30 = arith.divf %28, %29 : vector<16x64xf32>
    %31 = arith.mulf %24, %30 : vector<16x64xf32>
    %c0_11 = arith.constant 0 : index
    %c0_12 = arith.constant 0 : index
    %32 = vector.load %arg4[%c0_11, %c0_12] : memref<31x64xf32, #tpu.memory_space<vmem>>, vector<31x64xf32>
    %cst_13 = arith.constant 0.000000e+00 : f32
    %33 = vector.broadcast %cst_13 : f32 to vector<15x64xf32>
    %cst_14 = arith.constant 0.000000e+00 : f32
    %34 = vector.broadcast %cst_14 : f32 to vector<15x64xf32>
    %35 = tpu.concatenate %33, %31, %34 in 0 : vector<15x64xf32>, vector<16x64xf32>, vector<15x64xf32> -> vector<46x64xf32>
    %cst_15 = arith.constant 0.000000e+00 : f32
    %36 = vector.broadcast %cst_15 : f32 to vector<16x64xf32>
    %c0_16 = arith.constant 0 : index
    %c0_17 = arith.constant 0 : index
    %37 = vector.load %arg5[%c0_16, %c0_17] : memref<1x64xf32, #tpu.memory_space<vmem>>, vector<1x64xf32>
    %38 = vector.broadcast %37 : vector<1x64xf32> to vector<16x64xf32>
    %39 = arith.addf %36, %38 : vector<16x64xf32>
    %40 = vector.extract_strided_slice %35 {offsets = [0, 0], sizes = [16, 64], strides = [1, 1]} : vector<46x64xf32> to vector<16x64xf32>
    %41 = vector.extract_strided_slice %32 {offsets = [0, 0], sizes = [1, 64], strides = [1, 1]} : vector<31x64xf32> to vector<1x64xf32>
    %42 = vector.shape_cast %41 : vector<1x64xf32> to vector<64xf32>
    %43 = vector.shape_cast %42 : vector<64xf32> to vector<1x64xf32>
    %44 = vector.broadcast %43 : vector<1x64xf32> to vector<16x64xf32>
    %45 = arith.mulf %40, %44 : vector<16x64xf32>
    %46 = arith.addf %39, %45 : vector<16x64xf32>
    %47 = vector.extract_strided_slice %35 {offsets = [1, 0], sizes = [16, 64], strides = [1, 1]} : vector<46x64xf32> to vector<16x64xf32>
    %48 = vector.extract_strided_slice %32 {offsets = [1, 0], sizes = [1, 64], strides = [1, 1]} : vector<31x64xf32> to vector<1x64xf32>
    %49 = vector.shape_cast %48 : vector<1x64xf32> to vector<64xf32>
    %50 = vector.shape_cast %49 : vector<64xf32> to vector<1x64xf32>
    %51 = vector.broadcast %50 : vector<1x64xf32> to vector<16x64xf32>
    %52 = arith.mulf %47, %51 : vector<16x64xf32>
    %53 = arith.addf %46, %52 : vector<16x64xf32>
    %54 = vector.extract_strided_slice %35 {offsets = [2, 0], sizes = [16, 64], strides = [1, 1]} : vector<46x64xf32> to vector<16x64xf32>
    %55 = vector.extract_strided_slice %32 {offsets = [2, 0], sizes = [1, 64], strides = [1, 1]} : vector<31x64xf32> to vector<1x64xf32>
    %56 = vector.shape_cast %55 : vector<1x64xf32> to vector<64xf32>
    %57 = vector.shape_cast %56 : vector<64xf32> to vector<1x64xf32>
    %58 = vector.broadcast %57 : vector<1x64xf32> to vector<16x64xf32>
    %59 = arith.mulf %54, %58 : vector<16x64xf32>
    %60 = arith.addf %53, %59 : vector<16x64xf32>
    %61 = vector.extract_strided_slice %35 {offsets = [3, 0], sizes = [16, 64], strides = [1, 1]} : vector<46x64xf32> to vector<16x64xf32>
    %62 = vector.extract_strided_slice %32 {offsets = [3, 0], sizes = [1, 64], strides = [1, 1]} : vector<31x64xf32> to vector<1x64xf32>
    %63 = vector.shape_cast %62 : vector<1x64xf32> to vector<64xf32>
    %64 = vector.shape_cast %63 : vector<64xf32> to vector<1x64xf32>
    %65 = vector.broadcast %64 : vector<1x64xf32> to vector<16x64xf32>
    %66 = arith.mulf %61, %65 : vector<16x64xf32>
    %67 = arith.addf %60, %66 : vector<16x64xf32>
    %68 = vector.extract_strided_slice %35 {offsets = [4, 0], sizes = [16, 64], strides = [1, 1]} : vector<46x64xf32> to vector<16x64xf32>
    %69 = vector.extract_strided_slice %32 {offsets = [4, 0], sizes = [1, 64], strides = [1, 1]} : vector<31x64xf32> to vector<1x64xf32>
    %70 = vector.shape_cast %69 : vector<1x64xf32> to vector<64xf32>
    %71 = vector.shape_cast %70 : vector<64xf32> to vector<1x64xf32>
    %72 = vector.broadcast %71 : vector<1x64xf32> to vector<16x64xf32>
    %73 = arith.mulf %68, %72 : vector<16x64xf32>
    %74 = arith.addf %67, %73 : vector<16x64xf32>
    %75 = vector.extract_strided_slice %35 {offsets = [5, 0], sizes = [16, 64], strides = [1, 1]} : vector<46x64xf32> to vector<16x64xf32>
    %76 = vector.extract_strided_slice %32 {offsets = [5, 0], sizes = [1, 64], strides = [1, 1]} : vector<31x64xf32> to vector<1x64xf32>
    %77 = vector.shape_cast %76 : vector<1x64xf32> to vector<64xf32>
    %78 = vector.shape_cast %77 : vector<64xf32> to vector<1x64xf32>
    %79 = vector.broadcast %78 : vector<1x64xf32> to vector<16x64xf32>
    %80 = arith.mulf %75, %79 : vector<16x64xf32>
    %81 = arith.addf %74, %80 : vector<16x64xf32>
    %82 = vector.extract_strided_slice %35 {offsets = [6, 0], sizes = [16, 64], strides = [1, 1]} : vector<46x64xf32> to vector<16x64xf32>
    %83 = vector.extract_strided_slice %32 {offsets = [6, 0], sizes = [1, 64], strides = [1, 1]} : vector<31x64xf32> to vector<1x64xf32>
    %84 = vector.shape_cast %83 : vector<1x64xf32> to vector<64xf32>
    %85 = vector.shape_cast %84 : vector<64xf32> to vector<1x64xf32>
    %86 = vector.broadcast %85 : vector<1x64xf32> to vector<16x64xf32>
    %87 = arith.mulf %82, %86 : vector<16x64xf32>
    %88 = arith.addf %81, %87 : vector<16x64xf32>
    %89 = vector.extract_strided_slice %35 {offsets = [7, 0], sizes = [16, 64], strides = [1, 1]} : vector<46x64xf32> to vector<16x64xf32>
    %90 = vector.extract_strided_slice %32 {offsets = [7, 0], sizes = [1, 64], strides = [1, 1]} : vector<31x64xf32> to vector<1x64xf32>
    %91 = vector.shape_cast %90 : vector<1x64xf32> to vector<64xf32>
    %92 = vector.shape_cast %91 : vector<64xf32> to vector<1x64xf32>
    %93 = vector.broadcast %92 : vector<1x64xf32> to vector<16x64xf32>
    %94 = arith.mulf %89, %93 : vector<16x64xf32>
    %95 = arith.addf %88, %94 : vector<16x64xf32>
    %96 = vector.extract_strided_slice %35 {offsets = [8, 0], sizes = [16, 64], strides = [1, 1]} : vector<46x64xf32> to vector<16x64xf32>
    %97 = vector.extract_strided_slice %32 {offsets = [8, 0], sizes = [1, 64], strides = [1, 1]} : vector<31x64xf32> to vector<1x64xf32>
    %98 = vector.shape_cast %97 : vector<1x64xf32> to vector<64xf32>
    %99 = vector.shape_cast %98 : vector<64xf32> to vector<1x64xf32>
    %100 = vector.broadcast %99 : vector<1x64xf32> to vector<16x64xf32>
    %101 = arith.mulf %96, %100 : vector<16x64xf32>
    %102 = arith.addf %95, %101 : vector<16x64xf32>
    %103 = vector.extract_strided_slice %35 {offsets = [9, 0], sizes = [16, 64], strides = [1, 1]} : vector<46x64xf32> to vector<16x64xf32>
    %104 = vector.extract_strided_slice %32 {offsets = [9, 0], sizes = [1, 64], strides = [1, 1]} : vector<31x64xf32> to vector<1x64xf32>
    %105 = vector.shape_cast %104 : vector<1x64xf32> to vector<64xf32>
    %106 = vector.shape_cast %105 : vector<64xf32> to vector<1x64xf32>
    %107 = vector.broadcast %106 : vector<1x64xf32> to vector<16x64xf32>
    %108 = arith.mulf %103, %107 : vector<16x64xf32>
    %109 = arith.addf %102, %108 : vector<16x64xf32>
    %110 = vector.extract_strided_slice %35 {offsets = [10, 0], sizes = [16, 64], strides = [1, 1]} : vector<46x64xf32> to vector<16x64xf32>
    %111 = vector.extract_strided_slice %32 {offsets = [10, 0], sizes = [1, 64], strides = [1, 1]} : vector<31x64xf32> to vector<1x64xf32>
    %112 = vector.shape_cast %111 : vector<1x64xf32> to vector<64xf32>
    %113 = vector.shape_cast %112 : vector<64xf32> to vector<1x64xf32>
    %114 = vector.broadcast %113 : vector<1x64xf32> to vector<16x64xf32>
    %115 = arith.mulf %110, %114 : vector<16x64xf32>
    %116 = arith.addf %109, %115 : vector<16x64xf32>
    %117 = vector.extract_strided_slice %35 {offsets = [11, 0], sizes = [16, 64], strides = [1, 1]} : vector<46x64xf32> to vector<16x64xf32>
    %118 = vector.extract_strided_slice %32 {offsets = [11, 0], sizes = [1, 64], strides = [1, 1]} : vector<31x64xf32> to vector<1x64xf32>
    %119 = vector.shape_cast %118 : vector<1x64xf32> to vector<64xf32>
    %120 = vector.shape_cast %119 : vector<64xf32> to vector<1x64xf32>
    %121 = vector.broadcast %120 : vector<1x64xf32> to vector<16x64xf32>
    %122 = arith.mulf %117, %121 : vector<16x64xf32>
    %123 = arith.addf %116, %122 : vector<16x64xf32>
    %124 = vector.extract_strided_slice %35 {offsets = [12, 0], sizes = [16, 64], strides = [1, 1]} : vector<46x64xf32> to vector<16x64xf32>
    %125 = vector.extract_strided_slice %32 {offsets = [12, 0], sizes = [1, 64], strides = [1, 1]} : vector<31x64xf32> to vector<1x64xf32>
    %126 = vector.shape_cast %125 : vector<1x64xf32> to vector<64xf32>
    %127 = vector.shape_cast %126 : vector<64xf32> to vector<1x64xf32>
    %128 = vector.broadcast %127 : vector<1x64xf32> to vector<16x64xf32>
    %129 = arith.mulf %124, %128 : vector<16x64xf32>
    %130 = arith.addf %123, %129 : vector<16x64xf32>
    %131 = vector.extract_strided_slice %35 {offsets = [13, 0], sizes = [16, 64], strides = [1, 1]} : vector<46x64xf32> to vector<16x64xf32>
    %132 = vector.extract_strided_slice %32 {offsets = [13, 0], sizes = [1, 64], strides = [1, 1]} : vector<31x64xf32> to vector<1x64xf32>
    %133 = vector.shape_cast %132 : vector<1x64xf32> to vector<64xf32>
    %134 = vector.shape_cast %133 : vector<64xf32> to vector<1x64xf32>
    %135 = vector.broadcast %134 : vector<1x64xf32> to vector<16x64xf32>
    %136 = arith.mulf %131, %135 : vector<16x64xf32>
    %137 = arith.addf %130, %136 : vector<16x64xf32>
    %138 = vector.extract_strided_slice %35 {offsets = [14, 0], sizes = [16, 64], strides = [1, 1]} : vector<46x64xf32> to vector<16x64xf32>
    %139 = vector.extract_strided_slice %32 {offsets = [14, 0], sizes = [1, 64], strides = [1, 1]} : vector<31x64xf32> to vector<1x64xf32>
    %140 = vector.shape_cast %139 : vector<1x64xf32> to vector<64xf32>
    %141 = vector.shape_cast %140 : vector<64xf32> to vector<1x64xf32>
    %142 = vector.broadcast %141 : vector<1x64xf32> to vector<16x64xf32>
    %143 = arith.mulf %138, %142 : vector<16x64xf32>
    %144 = arith.addf %137, %143 : vector<16x64xf32>
    %145 = vector.extract_strided_slice %35 {offsets = [15, 0], sizes = [16, 64], strides = [1, 1]} : vector<46x64xf32> to vector<16x64xf32>
    %146 = vector.extract_strided_slice %32 {offsets = [15, 0], sizes = [1, 64], strides = [1, 1]} : vector<31x64xf32> to vector<1x64xf32>
    %147 = vector.shape_cast %146 : vector<1x64xf32> to vector<64xf32>
    %148 = vector.shape_cast %147 : vector<64xf32> to vector<1x64xf32>
    %149 = vector.broadcast %148 : vector<1x64xf32> to vector<16x64xf32>
    %150 = arith.mulf %145, %149 : vector<16x64xf32>
    %151 = arith.addf %144, %150 : vector<16x64xf32>
    %152 = vector.extract_strided_slice %35 {offsets = [16, 0], sizes = [16, 64], strides = [1, 1]} : vector<46x64xf32> to vector<16x64xf32>
    %153 = vector.extract_strided_slice %32 {offsets = [16, 0], sizes = [1, 64], strides = [1, 1]} : vector<31x64xf32> to vector<1x64xf32>
    %154 = vector.shape_cast %153 : vector<1x64xf32> to vector<64xf32>
    %155 = vector.shape_cast %154 : vector<64xf32> to vector<1x64xf32>
    %156 = vector.broadcast %155 : vector<1x64xf32> to vector<16x64xf32>
    %157 = arith.mulf %152, %156 : vector<16x64xf32>
    %158 = arith.addf %151, %157 : vector<16x64xf32>
    %159 = vector.extract_strided_slice %35 {offsets = [17, 0], sizes = [16, 64], strides = [1, 1]} : vector<46x64xf32> to vector<16x64xf32>
    %160 = vector.extract_strided_slice %32 {offsets = [17, 0], sizes = [1, 64], strides = [1, 1]} : vector<31x64xf32> to vector<1x64xf32>
    %161 = vector.shape_cast %160 : vector<1x64xf32> to vector<64xf32>
    %162 = vector.shape_cast %161 : vector<64xf32> to vector<1x64xf32>
    %163 = vector.broadcast %162 : vector<1x64xf32> to vector<16x64xf32>
    %164 = arith.mulf %159, %163 : vector<16x64xf32>
    %165 = arith.addf %158, %164 : vector<16x64xf32>
    %166 = vector.extract_strided_slice %35 {offsets = [18, 0], sizes = [16, 64], strides = [1, 1]} : vector<46x64xf32> to vector<16x64xf32>
    %167 = vector.extract_strided_slice %32 {offsets = [18, 0], sizes = [1, 64], strides = [1, 1]} : vector<31x64xf32> to vector<1x64xf32>
    %168 = vector.shape_cast %167 : vector<1x64xf32> to vector<64xf32>
    %169 = vector.shape_cast %168 : vector<64xf32> to vector<1x64xf32>
    %170 = vector.broadcast %169 : vector<1x64xf32> to vector<16x64xf32>
    %171 = arith.mulf %166, %170 : vector<16x64xf32>
    %172 = arith.addf %165, %171 : vector<16x64xf32>
    %173 = vector.extract_strided_slice %35 {offsets = [19, 0], sizes = [16, 64], strides = [1, 1]} : vector<46x64xf32> to vector<16x64xf32>
    %174 = vector.extract_strided_slice %32 {offsets = [19, 0], sizes = [1, 64], strides = [1, 1]} : vector<31x64xf32> to vector<1x64xf32>
    %175 = vector.shape_cast %174 : vector<1x64xf32> to vector<64xf32>
    %176 = vector.shape_cast %175 : vector<64xf32> to vector<1x64xf32>
    %177 = vector.broadcast %176 : vector<1x64xf32> to vector<16x64xf32>
    %178 = arith.mulf %173, %177 : vector<16x64xf32>
    %179 = arith.addf %172, %178 : vector<16x64xf32>
    %180 = vector.extract_strided_slice %35 {offsets = [20, 0], sizes = [16, 64], strides = [1, 1]} : vector<46x64xf32> to vector<16x64xf32>
    %181 = vector.extract_strided_slice %32 {offsets = [20, 0], sizes = [1, 64], strides = [1, 1]} : vector<31x64xf32> to vector<1x64xf32>
    %182 = vector.shape_cast %181 : vector<1x64xf32> to vector<64xf32>
    %183 = vector.shape_cast %182 : vector<64xf32> to vector<1x64xf32>
    %184 = vector.broadcast %183 : vector<1x64xf32> to vector<16x64xf32>
    %185 = arith.mulf %180, %184 : vector<16x64xf32>
    %186 = arith.addf %179, %185 : vector<16x64xf32>
    %187 = vector.extract_strided_slice %35 {offsets = [21, 0], sizes = [16, 64], strides = [1, 1]} : vector<46x64xf32> to vector<16x64xf32>
    %188 = vector.extract_strided_slice %32 {offsets = [21, 0], sizes = [1, 64], strides = [1, 1]} : vector<31x64xf32> to vector<1x64xf32>
    %189 = vector.shape_cast %188 : vector<1x64xf32> to vector<64xf32>
    %190 = vector.shape_cast %189 : vector<64xf32> to vector<1x64xf32>
    %191 = vector.broadcast %190 : vector<1x64xf32> to vector<16x64xf32>
    %192 = arith.mulf %187, %191 : vector<16x64xf32>
    %193 = arith.addf %186, %192 : vector<16x64xf32>
    %194 = vector.extract_strided_slice %35 {offsets = [22, 0], sizes = [16, 64], strides = [1, 1]} : vector<46x64xf32> to vector<16x64xf32>
    %195 = vector.extract_strided_slice %32 {offsets = [22, 0], sizes = [1, 64], strides = [1, 1]} : vector<31x64xf32> to vector<1x64xf32>
    %196 = vector.shape_cast %195 : vector<1x64xf32> to vector<64xf32>
    %197 = vector.shape_cast %196 : vector<64xf32> to vector<1x64xf32>
    %198 = vector.broadcast %197 : vector<1x64xf32> to vector<16x64xf32>
    %199 = arith.mulf %194, %198 : vector<16x64xf32>
    %200 = arith.addf %193, %199 : vector<16x64xf32>
    %201 = vector.extract_strided_slice %35 {offsets = [23, 0], sizes = [16, 64], strides = [1, 1]} : vector<46x64xf32> to vector<16x64xf32>
    %202 = vector.extract_strided_slice %32 {offsets = [23, 0], sizes = [1, 64], strides = [1, 1]} : vector<31x64xf32> to vector<1x64xf32>
    %203 = vector.shape_cast %202 : vector<1x64xf32> to vector<64xf32>
    %204 = vector.shape_cast %203 : vector<64xf32> to vector<1x64xf32>
    %205 = vector.broadcast %204 : vector<1x64xf32> to vector<16x64xf32>
    %206 = arith.mulf %201, %205 : vector<16x64xf32>
    %207 = arith.addf %200, %206 : vector<16x64xf32>
    %208 = vector.extract_strided_slice %35 {offsets = [24, 0], sizes = [16, 64], strides = [1, 1]} : vector<46x64xf32> to vector<16x64xf32>
    %209 = vector.extract_strided_slice %32 {offsets = [24, 0], sizes = [1, 64], strides = [1, 1]} : vector<31x64xf32> to vector<1x64xf32>
    %210 = vector.shape_cast %209 : vector<1x64xf32> to vector<64xf32>
    %211 = vector.shape_cast %210 : vector<64xf32> to vector<1x64xf32>
    %212 = vector.broadcast %211 : vector<1x64xf32> to vector<16x64xf32>
    %213 = arith.mulf %208, %212 : vector<16x64xf32>
    %214 = arith.addf %207, %213 : vector<16x64xf32>
    %215 = vector.extract_strided_slice %35 {offsets = [25, 0], sizes = [16, 64], strides = [1, 1]} : vector<46x64xf32> to vector<16x64xf32>
    %216 = vector.extract_strided_slice %32 {offsets = [25, 0], sizes = [1, 64], strides = [1, 1]} : vector<31x64xf32> to vector<1x64xf32>
    %217 = vector.shape_cast %216 : vector<1x64xf32> to vector<64xf32>
    %218 = vector.shape_cast %217 : vector<64xf32> to vector<1x64xf32>
    %219 = vector.broadcast %218 : vector<1x64xf32> to vector<16x64xf32>
    %220 = arith.mulf %215, %219 : vector<16x64xf32>
    %221 = arith.addf %214, %220 : vector<16x64xf32>
    %222 = vector.extract_strided_slice %35 {offsets = [26, 0], sizes = [16, 64], strides = [1, 1]} : vector<46x64xf32> to vector<16x64xf32>
    %223 = vector.extract_strided_slice %32 {offsets = [26, 0], sizes = [1, 64], strides = [1, 1]} : vector<31x64xf32> to vector<1x64xf32>
    %224 = vector.shape_cast %223 : vector<1x64xf32> to vector<64xf32>
    %225 = vector.shape_cast %224 : vector<64xf32> to vector<1x64xf32>
    %226 = vector.broadcast %225 : vector<1x64xf32> to vector<16x64xf32>
    %227 = arith.mulf %222, %226 : vector<16x64xf32>
    %228 = arith.addf %221, %227 : vector<16x64xf32>
    %229 = vector.extract_strided_slice %35 {offsets = [27, 0], sizes = [16, 64], strides = [1, 1]} : vector<46x64xf32> to vector<16x64xf32>
    %230 = vector.extract_strided_slice %32 {offsets = [27, 0], sizes = [1, 64], strides = [1, 1]} : vector<31x64xf32> to vector<1x64xf32>
    %231 = vector.shape_cast %230 : vector<1x64xf32> to vector<64xf32>
    %232 = vector.shape_cast %231 : vector<64xf32> to vector<1x64xf32>
    %233 = vector.broadcast %232 : vector<1x64xf32> to vector<16x64xf32>
    %234 = arith.mulf %229, %233 : vector<16x64xf32>
    %235 = arith.addf %228, %234 : vector<16x64xf32>
    %236 = vector.extract_strided_slice %35 {offsets = [28, 0], sizes = [16, 64], strides = [1, 1]} : vector<46x64xf32> to vector<16x64xf32>
    %237 = vector.extract_strided_slice %32 {offsets = [28, 0], sizes = [1, 64], strides = [1, 1]} : vector<31x64xf32> to vector<1x64xf32>
    %238 = vector.shape_cast %237 : vector<1x64xf32> to vector<64xf32>
    %239 = vector.shape_cast %238 : vector<64xf32> to vector<1x64xf32>
    %240 = vector.broadcast %239 : vector<1x64xf32> to vector<16x64xf32>
    %241 = arith.mulf %236, %240 : vector<16x64xf32>
    %242 = arith.addf %235, %241 : vector<16x64xf32>
    %243 = vector.extract_strided_slice %35 {offsets = [29, 0], sizes = [16, 64], strides = [1, 1]} : vector<46x64xf32> to vector<16x64xf32>
    %244 = vector.extract_strided_slice %32 {offsets = [29, 0], sizes = [1, 64], strides = [1, 1]} : vector<31x64xf32> to vector<1x64xf32>
    %245 = vector.shape_cast %244 : vector<1x64xf32> to vector<64xf32>
    %246 = vector.shape_cast %245 : vector<64xf32> to vector<1x64xf32>
    %247 = vector.broadcast %246 : vector<1x64xf32> to vector<16x64xf32>
    %248 = arith.mulf %243, %247 : vector<16x64xf32>
    %249 = arith.addf %242, %248 : vector<16x64xf32>
    %250 = vector.extract_strided_slice %35 {offsets = [30, 0], sizes = [16, 64], strides = [1, 1]} : vector<46x64xf32> to vector<16x64xf32>
    %251 = vector.extract_strided_slice %32 {offsets = [30, 0], sizes = [1, 64], strides = [1, 1]} : vector<31x64xf32> to vector<1x64xf32>
    %252 = vector.shape_cast %251 : vector<1x64xf32> to vector<64xf32>
    %253 = vector.shape_cast %252 : vector<64xf32> to vector<1x64xf32>
    %254 = vector.broadcast %253 : vector<1x64xf32> to vector<16x64xf32>
    %255 = arith.mulf %250, %254 : vector<16x64xf32>
    %256 = arith.addf %249, %255 : vector<16x64xf32>
    %257 = arith.negf %256 : vector<16x64xf32>
    %258 = math.exp %257 : vector<16x64xf32>
    %cst_18 = arith.constant 1.000000e+00 : f32
    %259 = vector.broadcast %cst_18 : f32 to vector<16x64xf32>
    %260 = arith.addf %259, %258 : vector<16x64xf32>
    %261 = arith.divf %259, %260 : vector<16x64xf32>
    %262 = arith.mulf %256, %261 : vector<16x64xf32>
    %c0_19 = arith.constant 0 : index
    %c0_20 = arith.constant 0 : index
    %263 = vector.load %arg6[%c0_19, %c0_20] : memref<64x32xf32, #tpu.memory_space<vmem>>, vector<64x32xf32>
    %cst_21 = arith.constant dense<0.000000e+00> : vector<16x32xf32>
    %264 = tpu.matmul %262, %263, %cst_21 {dimension_numbers = #tpu.dot_dimension_numbers<[1], [0], [0], [1], [0, 0, 1, 1], [], []>} : vector<16x64xf32>, vector<64x32xf32>, vector<16x32xf32> -> vector<16x32xf32>
    %c0_22 = arith.constant 0 : index
    %c0_23 = arith.constant 0 : index
    %265 = vector.load %arg7[%c0_22, %c0_23] : memref<1x32xf32, #tpu.memory_space<vmem>>, vector<1x32xf32>
    %266 = vector.broadcast %265 : vector<1x32xf32> to vector<16x32xf32>
    %267 = arith.addf %264, %266 : vector<16x32xf32>
    %c0_24 = arith.constant 0 : index
    %c0_25 = arith.constant 0 : index
    %268 = vector.load %arg8[%c0_24, %c0_25] : memref<16x32xf32, #tpu.memory_space<vmem>>, vector<16x32xf32>
    tpu.vector_store %arg8[%c0_24, %c0_25], %267 {strides = array<i32>} : memref<16x32xf32, #tpu.memory_space<vmem>>, vector<16x32xf32>,
    return
  }
  func.func @transform_0(%arg0: i32) -> (i32, i32) {
    %c0_i32 = arith.constant 0 : i32
    %c0_i32_0 = arith.constant 0 : i32
    return %arg0, %c0_i32 : i32, i32
  }
  func.func @transform_1(%arg0: i32) -> (i32, i32) {
    %c0_i32 = arith.constant 0 : i32
    %c0_i32_0 = arith.constant 0 : i32
    %c0_i32_1 = arith.constant 0 : i32
    return %c0_i32, %c0_i32_0 : i32, i32
  }
  func.func @transform_2(%arg0: i32) -> (i32, i32) {
    %c0_i32 = arith.constant 0 : i32
    %c0_i32_0 = arith.constant 0 : i32
    %c0_i32_1 = arith.constant 0 : i32
    return %c0_i32, %c0_i32_0 : i32, i32
  }
  func.func @transform_3(%arg0: i32) -> (i32, i32) {
    %c0_i32 = arith.constant 0 : i32
    %c0_i32_0 = arith.constant 0 : i32
    %c0_i32_1 = arith.constant 0 : i32
    return %c0_i32, %c0_i32_0 : i32, i32
  }
  func.func @transform_4(%arg0: i32) -> (i32, i32) {
    %c0_i32 = arith.constant 0 : i32
    %c0_i32_0 = arith.constant 0 : i32
    %c0_i32_1 = arith.constant 0 : i32
    return %c0_i32, %c0_i32_0 : i32, i32
  }
  func.func @transform_5(%arg0: i32) -> (i32, i32) {
    %c0_i32 = arith.constant 0 : i32
    %c0_i32_0 = arith.constant 0 : i32
    %c0_i32_1 = arith.constant 0 : i32
    return %c0_i32, %c0_i32_0 : i32, i32
  }
  func.func @transform_6(%arg0: i32) -> (i32, i32) {
    %c0_i32 = arith.constant 0 : i32
    %c0_i32_0 = arith.constant 0 : i32
    %c0_i32_1 = arith.constant 0 : i32
    return %c0_i32, %c0_i32_0 : i32, i32
  }
  func.func @transform_7(%arg0: i32) -> (i32, i32) {
    %c0_i32 = arith.constant 0 : i32
    %c0_i32_0 = arith.constant 0 : i32
    return %arg0, %c0_i32 : i32, i32
  }
}

</mosaic_0001>

<llo_original>
// kernel: tpu_custom_call.1
$region0: #{tpu_custom_call.1}
  #allocation0 [shape = 'u32[]', space=smem, size = 0x4, offset = 0x4, fixed_abs, tag = 'smem constant byte address 0x4 - core index']
  #allocation1 [shape = 'u32[144,128]{1,0:T(1,128)}', space=vmem, size = 0x12000, scoped, tag = 'internal scratch']
  %s0 = inlined_call_operand.vmem [shape: f32[32,32], index: 0, kind: input, shape index: {}]
  %s1 = inlined_call_operand.vmem [shape: f32[32,128], index: 1, kind: input, shape index: {}]
  %s2 = inlined_call_operand.vmem [shape: f32[1,128], index: 2, kind: input, shape index: {}]
  %s3 = inlined_call_operand.vmem [shape: f32[31,64], index: 3, kind: input, shape index: {}]
  %s4 = inlined_call_operand.vmem [shape: f32[1,64], index: 4, kind: input, shape index: {}]
  %s5 = inlined_call_operand.vmem [shape: f32[64,32], index: 5, kind: input, shape index: {}]
  %s6 = inlined_call_operand.vmem [shape: f32[1,32], index: 6, kind: input, shape index: {}]
  %s7 = inlined_call_operand.hbm [shape: f32[32,32], index: 7, kind: output, shape index: {}]
  %s8 = sld [smem:[#allocation0]]
  $region61: #{tpu_custom_call.1} parent=0
    _
  %s10 = ssub.s32 1, %s8
  %s11 = scalar_select 0, %s10, %s8
  $region1: #{tpu_custom_call.1} parent=0
    #allocation2 [shape = 'u8[16384]{0}', space=vmem, size = 0x4000, scoped, tag = 'output window, operand 0']
    #allocation3 [shape = 's32[2]{0}', space=sflag, size = 0x8, scoped, tag = 'scoped memory for tpu_custom_call.1']
    %12 = vsyncpa [#allocation3], 0
    %s13 = scalar_lea.sflag [#allocation3], 1
    %14 = vsyncpa %s13, 0
    loop: start=0, step=1, limit=4
    $region2: #{tpu_custom_call.1} parent=1 // loop_pre_header
      _
    $region3: #{tpu_custom_call.1} parent=1 // loop_header
      %s16 = sphi 0, %s20
      %p17 = scmp.ge.s32.totalorder %s16, 4
      %s26 = sphi 0, %s28
      %s29 = sphi 0, %s26
      %s30 = sphi 0, %s29
      %s46 = sphi 0, %s30
      %s50 = sphi 0, %s50
      %s52 = sphi 0, %s50
      %s53 = sphi 0, %s52
      %s67 = sphi 0, %s53
      %s71 = sphi 0, %s71
      %s73 = sphi 0, %s71
      %s74 = sphi 0, %s73
      %s88 = sphi 0, %s74
      %s92 = sphi 0, %s92
      %s94 = sphi 0, %s92
      %s95 = sphi 0, %s94
      %s109 = sphi 0, %s95
      %s113 = sphi 0, %s113
      %s115 = sphi 0, %s113
      %s116 = sphi 0, %s115
      %s130 = sphi 0, %s116
      %s134 = sphi 0, %s134
      %s136 = sphi 0, %s134
      %s137 = sphi 0, %s136
      %s151 = sphi 0, %s137
      %s155 = sphi 0, %s155
      %s157 = sphi 0, %s155
      %s158 = sphi 0, %s157
      %s172 = sphi 0, %s158
      %s178 = sphi 0, %s180
      %s181 = sphi 0, %s178
      %s182 = sphi 0, %s181
      %s198 = sphi 0, %s182
    $region4: #{tpu_custom_call.1} parent=1 // loop_header_branch
      %19 = sbr.rel (%p17) target = $region8
    $region5: #{tpu_custom_call.1} parent=1 // loop_body
      %s21 = ssub.s32 %s16, 1
      %s22 = ssub.s32 %s16, 2
      %s23 = sadd.s32 %s16, 1
      %s24 = ssub.s32 %s16, %s23
      %p25 = scmp.eq.s32.totalorder %s24, 0
      %s27 = sadd.s32 %s26, 1
      %s28 = scalar_select %p25, %s26, %s27
      %p31 = pneg %p25
      %p32 = scmp.eq.s32.totalorder %s16, 1
      %p33 = por %p31, %p32
      %p34 = scmp.ne.s32.totalorder %s26, %s29
      %p35 = scmp.eq.s32.totalorder %s16, 0
      %p36 = por %p34, %p35
      %p37 = scmp.ne.s32.totalorder %s26, %s29
      %p38 = scmp.eq.s32.totalorder %s21, 1
      %p39 = por %p37, %p38
      %p40 = scmp.ne.s32.totalorder %s29, %s30
      %p41 = scmp.eq.s32.totalorder %s21, 0
      %p42 = por %p40, %p41
      %p43 = scmp.ne.s32.totalorder %s29, %s30
      %p44 = scmp.eq.s32.totalorder %s22, 1
      %p45 = por %p43, %p44
      %p47 = scmp.ne.s32.totalorder %s30, %s46
      %p48 = scmp.eq.s32.totalorder %s22, 0
      %p49 = por %p47, %p48
      %s51 = sadd.s32 %s50, 1
      %p54 = scmp.eq.s32.totalorder %s16, 1
      %p55 = scmp.ne.s32.totalorder %s50, %s52
      %p56 = scmp.eq.s32.totalorder %s16, 0
      %p57 = por %p55, %p56
      %p58 = scmp.ne.s32.totalorder %s50, %s52
      %p59 = scmp.eq.s32.totalorder %s21, 1
      %p60 = por %p58, %p59
      %p61 = scmp.ne.s32.totalorder %s52, %s53
      %p62 = scmp.eq.s32.totalorder %s21, 0
      %p63 = por %p61, %p62
      %p64 = scmp.ne.s32.totalorder %s52, %s53
      %p65 = scmp.eq.s32.totalorder %s22, 1
      %p66 = por %p64, %p65
      %p68 = scmp.ne.s32.totalorder %s53, %s67
      %p69 = scmp.eq.s32.totalorder %s22, 0
      %p70 = por %p68, %p69
      %s72 = sadd.s32 %s71, 1
      %p75 = scmp.eq.s32.totalorder %s16, 1
      %p76 = scmp.ne.s32.totalorder %s71, %s73
      %p77 = scmp.eq.s32.totalorder %s16, 0
      %p78 = por %p76, %p77
      %p79 = scmp.ne.s32.totalorder %s71, %s73
      %p80 = scmp.eq.s32.totalorder %s21, 1
      %p81 = por %p79, %p80
      %p82 = scmp.ne.s32.totalorder %s73, %s74
      %p83 = scmp.eq.s32.totalorder %s21, 0
      %p84 = por %p82, %p83
      %p85 = scmp.ne.s32.totalorder %s73, %s74
      %p86 = scmp.eq.s32.totalorder %s22, 1
      %p87 = por %p85, %p86
      %p89 = scmp.ne.s32.totalorder %s74, %s88
      %p90 = scmp.eq.s32.totalorder %s22, 0
      %p91 = por %p89, %p90
      %s93 = sadd.s32 %s92, 1
      %p96 = scmp.eq.s32.totalorder %s16, 1
      %p97 = scmp.ne.s32.totalorder %s92, %s94
      %p98 = scmp.eq.s32.totalorder %s16, 0
      %p99 = por %p97, %p98
      %p100 = scmp.ne.s32.totalorder %s92, %s94
      %p101 = scmp.eq.s32.totalorder %s21, 1
      %p102 = por %p100, %p101
      %p103 = scmp.ne.s32.totalorder %s94, %s95
      %p104 = scmp.eq.s32.totalorder %s21, 0
      %p105 = por %p103, %p104
      %p106 = scmp.ne.s32.totalorder %s94, %s95
      %p107 = scmp.eq.s32.totalorder %s22, 1
      %p108 = por %p106, %p107
      %p110 = scmp.ne.s32.totalorder %s95, %s109
      %p111 = scmp.eq.s32.totalorder %s22, 0
      %p112 = por %p110, %p111
      %s114 = sadd.s32 %s113, 1
      %p117 = scmp.eq.s32.totalorder %s16, 1
      %p118 = scmp.ne.s32.totalorder %s113, %s115
      %p119 = scmp.eq.s32.totalorder %s16, 0
      %p120 = por %p118, %p119
      %p121 = scmp.ne.s32.totalorder %s113, %s115
      %p122 = scmp.eq.s32.totalorder %s21, 1
      %p123 = por %p121, %p122
      %p124 = scmp.ne.s32.totalorder %s115, %s116
      %p125 = scmp.eq.s32.totalorder %s21, 0
      %p126 = por %p124, %p125
      %p127 = scmp.ne.s32.totalorder %s115, %s116
      %p128 = scmp.eq.s32.totalorder %s22, 1
      %p129 = por %p127, %p128
      %p131 = scmp.ne.s32.totalorder %s116, %s130
      %p132 = scmp.eq.s32.totalorder %s22, 0
      %p133 = por %p131, %p132
      %s135 = sadd.s32 %s134, 1
      %p138 = scmp.eq.s32.totalorder %s16, 1
      %p139 = scmp.ne.s32.totalorder %s134, %s136
      %p140 = scmp.eq.s32.totalorder %s16, 0
      %p141 = por %p139, %p140
      %p142 = scmp.ne.s32.totalorder %s134, %s136
      %p143 = scmp.eq.s32.totalorder %s21, 1
      %p144 = por %p142, %p143
      %p145 = scmp.ne.s32.totalorder %s136, %s137
      %p146 = scmp.eq.s32.totalorder %s21, 0
      %p147 = por %p145, %p146
      %p148 = scmp.ne.s32.totalorder %s136, %s137
      %p149 = scmp.eq.s32.totalorder %s22, 1
      %p150 = por %p148, %p149
      %p152 = scmp.ne.s32.totalorder %s137, %s151
      %p153 = scmp.eq.s32.totalorder %s22, 0
      %p154 = por %p152, %p153
      %s156 = sadd.s32 %s155, 1
      %p159 = scmp.eq.s32.totalorder %s16, 1
      %p160 = scmp.ne.s32.totalorder %s155, %s157
      %p161 = scmp.eq.s32.totalorder %s16, 0
      %p162 = por %p160, %p161
      %p163 = scmp.ne.s32.totalorder %s155, %s157
      %p164 = scmp.eq.s32.totalorder %s21, 1
      %p165 = por %p163, %p164
      %p166 = scmp.ne.s32.totalorder %s157, %s158
      %p167 = scmp.eq.s32.totalorder %s21, 0
      %p168 = por %p166, %p167
      %p169 = scmp.ne.s32.totalorder %s157, %s158
      %p170 = scmp.eq.s32.totalorder %s22, 1
      %p171 = por %p169, %p170
      %p173 = scmp.ne.s32.totalorder %s158, %s172
      %p174 = scmp.eq.s32.totalorder %s22, 0
      %p175 = por %p173, %p174
      %s176 = ssub.s32 %s16, %s23
      %p177 = scmp.eq.s32.totalorder %s176, 0
      %s179 = sadd.s32 %s178, 1
      %s180 = scalar_select %p177, %s178, %s179
      %p183 = pneg %p177
      %p184 = scmp.eq.s32.totalorder %s16, 1
      %p185 = por %p183, %p184
      %p186 = scmp.ne.s32.totalorder %s178, %s181
      %p187 = scmp.eq.s32.totalorder %s16, 0
      %p188 = por %p186, %p187
      %p189 = scmp.ne.s32.totalorder %s178, %s181
      %p190 = scmp.eq.s32.totalorder %s21, 1
      %p191 = por %p189, %p190
      %p192 = scmp.ne.s32.totalorder %s181, %s182
      %p193 = scmp.eq.s32.totalorder %s21, 0
      %p194 = por %p192, %p193
      %p195 = scmp.ne.s32.totalorder %s181, %s182
      %p196 = scmp.eq.s32.totalorder %s22, 1
      %p197 = por %p195, %p196
      %p199 = scmp.ne.s32.totalorder %s182, %s198
      %p200 = scmp.eq.s32.totalorder %s22, 0
      %p201 = por %p199, %p200
      %p202 = scmp.le.s32.totalorder 1, %s16
      %p203 = scmp.lt.s32.totalorder %s16, 3
      %p204 = pnand %p202, %p203
      %p205 = pneg %p204
      // Predicated region
      $region9: #{tpu_custom_call.1} parent=5 // pred_check
        _
      $region10: #{tpu_custom_call.1} parent=5 // pred_check_branch
        %207 = sbr.rel (%p204) target = $region12
      $region11: #{tpu_custom_call.1} parent=5 // pred_region
        %s208 = ssub.s32 %s16, 1
        // Predicated region
        $region13: #{tpu_custom_call.1} parent=11 // pred_check
          %p209 = pneg %p63
        $region14: #{tpu_custom_call.1} parent=11 // pred_check_branch
          %211 = sbr.rel (%p209) target = $region16
        $region15: #{tpu_custom_call.1} parent=11 // pred_region
          _
        $region16: #{tpu_custom_call.1} parent=11 // pred_fallthru
          _
        // Predicated region
        $region17: #{tpu_custom_call.1} parent=11 // pred_check
          %p212 = pneg %p84
        $region18: #{tpu_custom_call.1} parent=11 // pred_check_branch
          %214 = sbr.rel (%p212) target = $region20
        $region19: #{tpu_custom_call.1} parent=11 // pred_region
          _
        $region20: #{tpu_custom_call.1} parent=11 // pred_fallthru
          _
        // Predicated region
        $region21: #{tpu_custom_call.1} parent=11 // pred_check
          %p215 = pneg %p105
        $region22: #{tpu_custom_call.1} parent=11 // pred_check_branch
          %217 = sbr.rel (%p215) target = $region24
        $region23: #{tpu_custom_call.1} parent=11 // pred_region
          _
        $region24: #{tpu_custom_call.1} parent=11 // pred_fallthru
          _
        // Predicated region
        $region25: #{tpu_custom_call.1} parent=11 // pred_check
          %p218 = pneg %p126
        $region26: #{tpu_custom_call.1} parent=11 // pred_check_branch
          %220 = sbr.rel (%p218) target = $region28
        $region27: #{tpu_custom_call.1} parent=11 // pred_region
          _
        $region28: #{tpu_custom_call.1} parent=11 // pred_fallthru
          _
        // Predicated region
        $region29: #{tpu_custom_call.1} parent=11 // pred_check
          %p221 = pneg %p147
        $region30: #{tpu_custom_call.1} parent=11 // pred_check_branch
          %223 = sbr.rel (%p221) target = $region32
        $region31: #{tpu_custom_call.1} parent=11 // pred_region
          _
        $region32: #{tpu_custom_call.1} parent=11 // pred_fallthru
          _
        // Predicated region
        $region33: #{tpu_custom_call.1} parent=11 // pred_check
          %p224 = pneg %p168
        $region34: #{tpu_custom_call.1} parent=11 // pred_check_branch
          %226 = sbr.rel (%p224) target = $region36
        $region35: #{tpu_custom_call.1} parent=11 // pred_region
          _
        $region36: #{tpu_custom_call.1} parent=11 // pred_fallthru
          _
      $region12: #{tpu_custom_call.1} parent=5 // pred_fallthru
        _
      %p227 = scmp.lt.s32.totalorder %s16, 2
      // Predicated region
      $region37: #{tpu_custom_call.1} parent=5 // pred_check
        %p228 = pneg %p227
      $region38: #{tpu_custom_call.1} parent=5 // pred_check_branch
        %230 = sbr.rel (%p228) target = $region40
      $region39: #{tpu_custom_call.1} parent=5 // pred_region
        // Predicated region
        $region41: #{tpu_custom_call.1} parent=39 // pred_check
          %p231 = pneg %p36
        $region42: #{tpu_custom_call.1} parent=39 // pred_check_branch
          %233 = sbr.rel (%p231) target = $region44
        $region43: #{tpu_custom_call.1} parent=39 // pred_region
          %s234 = smul.u32 2, %s16
          %p235 = scmp.lt.s32.totalorder %s234, 3
          %s236 = scalar_select %p235, %s234, 3
          %s237 = smul.addr %s236, 8
          %s238 = scalar_lea.vmem %s0, %s237
          %s239 = smul.u32 2, %s16
        $region44: #{tpu_custom_call.1} parent=39 // pred_fallthru
          _
      $region40: #{tpu_custom_call.1} parent=5 // pred_fallthru
        _
      %p240 = scmp.le.s32.totalorder 1, %s16
      %p241 = scmp.lt.s32.totalorder %s16, 3
      %p242 = pnand %p240, %p241
      %p243 = pneg %p242
      // Predicated region
      $region45: #{tpu_custom_call.1} parent=5 // pred_check
        _
      $region46: #{tpu_custom_call.1} parent=5 // pred_check_branch
        %245 = sbr.rel (%p242) target = $region48
      $region47: #{tpu_custom_call.1} parent=5 // pred_region
        %s246 = ssub.s32 %s16, 1
        %s247 = smul.u32 2, %s21
        %p248 = scmp.lt.s32.totalorder %s247, 3
        %s249 = scalar_select %p248, %s247, 3
        %s250 = smul.addr %s249, 8
        %s251 = scalar_lea.vmem %s0, %s250
        %p252 = pneg %p42
        %p253 = pneg %p39
        %p254 = pneg %p63
        %p255 = pneg %p60
        %p256 = pneg %p84
        %p257 = pneg %p81
        %p258 = pneg %p105
        %p259 = pneg %p102
        %p260 = pneg %p126
        %p261 = pneg %p123
        %p262 = pneg %p147
        %p263 = pneg %p144
        %p264 = pneg %p168
        %p265 = pneg %p165
        %p266 = pneg %p194
        %p267 = pneg %p191
        %s268 = sand.u32 %s181, 1
        %s269 = scalar_lea.sflag [#allocation3], %s268
        %s270 = sand.u32 %s181, 1
        %s271 = smul.addr %s270, 16
        %s272 = scalar_lea.vmem [#allocation2], %s271
        %s273 = smul.u32 2, %s21
        %p274 = scmp.lt.s32.totalorder %s273, 3
        %s275 = scalar_select %p274, %s273, 3
        %s276 = smul.addr %s275, 8
        %s277 = scalar_lea.vmem %s0, %s276
        %s278 = smul.u32 2, %s21
        %s279 = smul.u32 2, %s21
        %v280 = vld [vmem:[%s277] sm:$0xff]
        %v281 = vld [vmem:[%s277 + $0x8] sm:$0xff]
        %vm282 = vcmask 261120
        %v283 = vsel %vm282, %v280, 0.0
        %284 = vadd.xlane.f32.xlu0 %v283
        %v285 = vpop.xlane.xlu0 %284
        %v286 = vsel %vm282, %v281, 0.0
        %287 = vadd.xlane.f32.xlu0 %v286
        %v288 = vpop.xlane.xlu0 %287
        %v289 = vrcp.pop 32.0
        %v290 = vmul.f32 %v285, %v289
        %v291 = vmul.f32 %v288, %v289
        %v292 = vsub.f32 %v280, %v290
        %v293 = vsub.f32 %v281, %v291
        %v294 = vmul.f32 %v292, %v292
        %v295 = vmul.f32 %v293, %v293
        %v296 = vsel %vm282, %v294, 0.0
        %297 = vadd.xlane.f32.xlu0 %v296
        %v298 = vpop.xlane.xlu0 %297
        %v299 = vsel %vm282, %v295, 0.0
        %300 = vadd.xlane.f32.xlu0 %v299
        %v301 = vpop.xlane.xlu0 %300
        %v302 = vmul.f32 %v298, %v289
        %v303 = vmul.f32 %v301, %v289
        %v304 = vadd.f32 %v302, 1e-05
        %v305 = vadd.f32 %v303, 1e-05
        %v306 = vrsqrt.pop %v304
        %v307 = vrsqrt.pop %v305
        %v308 = vmul.f32 %v292, %v306
        %v309 = vmul.f32 %v293, %v307
        %v310 = vld [vmem:[%s1] sm:$0xff]
        %v311 = vld [vmem:[%s1 + $0x8] sm:$0xff]
        %v312 = vld [vmem:[%s1 + $0x10] sm:$0xff]
        %v313 = vld [vmem:[%s1 + $0x18] sm:$0xff]
        %v314 = vld [vmem:[%s2] sm:$0x1]
        %v316 = vlaneseq
        %v317 = vshrl.u32 %v316, 7
        %v318 = vsub.s32 0, %v317
        %v319 = vrot.slane %v314, %v318
        %v322 = vsel %vm282, %v308, 0
        %v325 = vsel %vm282, %v309, 0
        %327 = vmatprep.subr.mxu0 0.0
        %328 = vmatpush1.msra.mxu0 0.0
        %329 = vmatprep.subr.mxu0 0.0
        %330 = vmatpush1.msra.mxu0 0.0
        %331 = vmatprep.subr.mxu0 0.0
        %332 = vmatpush1.msra.mxu0 0.0
        %333 = vmatprep.subr.mxu0 0.0
        %334 = vmatpush1.msra.mxu0 0.0
        %335 = vmatprep.subr.mxu0 0.0
        %336 = vmatpush1.msra.mxu0 0.0
        %337 = vmatprep.subr.mxu0 0.0
        %338 = vmatpush1.msra.mxu0 0.0
        %339 = vmatprep.subr.mxu0 0.0
        %340 = vmatpush1.msra.mxu0 0.0
        %341 = vmatprep.subr.mxu0 0.0
        %342 = vmatpush1.msra.mxu0 0.0
        %343 = vmatprep.subr.mxu0 0.0
        %344 = vmatpush1.msra.mxu0 0.0
        %345 = vmatprep.subr.mxu0 0.0
        %346 = vmatpush1.msra.mxu0 0.0
        %347 = vmatprep.subr.mxu0 0.0
        %348 = vmatpush1.msra.mxu0 0.0
        %349 = vmatprep.subr.mxu0 0.0
        %350 = vmatpush1.msra.mxu0 0.0
        %351 = vmatprep.subr.mxu0 0.0
        %352 = vmatpush1.msra.mxu0 %v313
        %353 = vmatprep.subr.mxu0 0.0
        %354 = vmatpush1.msra.mxu0 %v312
        %355 = vmatprep.subr.mxu0 0.0
        %356 = vmatpush1.msra.mxu0 %v311
        %357 = vmatprep.subr.mxu0 0.0
        %358 = vmatpush1.msra.mxu0 %v310
        %359 = vmatprep.subr.mxu0 0.0
        %360 = vmatpush2.msra.mxu0 0.0
        %361 = vmatprep.subr.mxu0 0.0
        %362 = vmatpush2.msra.mxu0 0.0
        %363 = vmatprep.subr.mxu0 0.0
        %364 = vmatpush2.msra.mxu0 0.0
        %365 = vmatprep.subr.mxu0 0.0
        %366 = vmatpush2.msra.mxu0 0.0
        %367 = vmatprep.subr.mxu0 0.0
        %368 = vmatpush2.msra.mxu0 0.0
        %369 = vmatprep.subr.mxu0 0.0
        %370 = vmatpush2.msra.mxu0 0.0
        %371 = vmatprep.subr.mxu0 0.0
        %372 = vmatpush2.msra.mxu0 0.0
        %373 = vmatprep.subr.mxu0 0.0
        %374 = vmatpush2.msra.mxu0 0.0
        %375 = vmatprep.subr.mxu0 0.0
        %376 = vmatpush2.msra.mxu0 0.0
        %377 = vmatprep.subr.mxu0 0.0
        %378 = vmatpush2.msra.mxu0 0.0
        %379 = vmatprep.subr.mxu0 0.0
        %380 = vmatpush2.msra.mxu0 0.0
        %381 = vmatprep.subr.mxu0 0.0
        %382 = vmatpush2.msra.mxu0 0.0
        %383 = vmatprep.subr.mxu0 0.0
        %384 = vmatpush2.msra.mxu0 0.0
        %385 = vmatprep.subr.mxu0 0.0
        %386 = vmatpush2.msra.mxu0 0.0
        %387 = vmatprep.subr.mxu0 0.0
        %388 = vmatpush2.msra.mxu0 0.0
        %389 = vmatprep.subr.mxu0 0.0
        %390 = vmatpush2.msra.mxu0 0.0
        %391 = vmatprep.mubr.f32.mxu0 0.0
        %392 = vmatmul.mubr.f32.gmra.mxu0 %v322
        %v393 = vpop.f32.mrf.mxu0
        %v394 = vadd.f32 %v319, %v393
        %v395 = vpop.f32.mrf.mxu0
        %396 = vmatprep.mubr.f32.mxu0 0.0
        %397 = vmatmul.mubr.f32.gmra.mxu0 %v325
        %v398 = vpop.f32.mrf.mxu0
        %v399 = vadd.f32 %v319, %v398
        %v400 = vpop.f32.mrf.mxu0
        %401 = vdwg.mxu0
        %v402 = vxor.u32 %v394, 2147483648
        %v403 = vxor.u32 %v399, 2147483648
        %v404 = vmul.f32 %v402, 1.442695
        %v405 = vpow.pop %v404
        %v406 = vmul.f32 %v403, 1.442695
        %v407 = vpow.pop %v406
        %v408 = vadd.f32 %v405, 1.0
        %v409 = vadd.f32 %v407, 1.0
        %v410 = vrcp.pop %v408
        %v411 = vmul.f32 1.0, %v410
        %v412 = vrcp.pop %v409
        %v413 = vmul.f32 1.0, %v412
        %416 = vrot.lane.b32.xlu0 %v411, 64
        %v417 = vpop.permute.xlu0 %416
        %418 = vrot.lane.b32.xlu0 %v413, 64
        %v419 = vpop.permute.xlu0 %418
        %v422 = vmul.f32 %v394, %v417
        %v423 = vmul.f32 %v399, %v419
        %v424 = vld [vmem:[%s3] sm:$0xff]
        %v425 = vld [vmem:[%s3 + $0x8] sm:$0xff]
        %v426 = vld [vmem:[%s3 + $0x10] sm:$0xff]
        %v427 = vld [vmem:[%s3 + $0x18] sm:$0x7f]
        %vm430 = vcmask 1046528
        %v431 = vrot.slane %v422, 1
        %v432 = vrot.slane %v423, 1
        %v433 = vsel %vm430, %v431, %v432
        %v437 = vsel %vm430, 0.0, %v431
        %v438 = vsel %vm430, %v432, 0.0
        %v439 = vld [vmem:[%s4] sm:$0x1]
        %v441 = vlaneseq
        %v442 = vshrl.u32 %v441, 7
        %v443 = vsub.s32 0, %v442
        %v444 = vrot.slane %v439, %v443
        %v446 = vadd.f32 %v444, 0.0
        %v447 = vlaneseq
        %v448 = vshrl.u32 %v447, 7
        %v449 = vsub.s32 0, %v448
        %v450 = vrot.slane %v424, %v449
        %v451 = vmul.f32 %v450, 0.0
        %v452 = vmul.f32 %v437, %v450
        %v453 = vadd.f32 %v446, %v451
        %v454 = vadd.f32 %v446, %v452
        %v455 = vlaneseq
        %v456 = vshrl.u32 %v455, 7
        %v457 = vsub.s32 1, %v456
        %v458 = vrot.slane %v424, %v457
        %v459 = vmul.f32 %v458, 0.0
        %v460 = vmul.f32 %v437, %v458
        %v461 = vmul.f32 %v433, %v458
        %v465 = vrot.slane %v459, 1
        %v466 = vrot.slane %v460, 1
        %v467 = vsel %vm430, %v465, %v466
        %v468 = vrot.slane %v461, 1
        %v469 = vsel %vm430, %v466, %v468
        %v472 = vadd.f32 %v453, %v467
        %v473 = vadd.f32 %v454, %v469
        %v474 = vlaneseq
        %v475 = vshrl.u32 %v474, 7
        %v476 = vsub.s32 2, %v475
        %v477 = vrot.slane %v424, %v476
        %v478 = vmul.f32 %v477, 0.0
        %v479 = vmul.f32 %v437, %v477
        %v480 = vmul.f32 %v433, %v477
        %vm484 = vcmask 1045504
        %v485 = vrot.slane %v478, 2
        %v486 = vrot.slane %v479, 2
        %v487 = vsel %vm484, %v485, %v486
        %v488 = vrot.slane %v480, 2
        %v489 = vsel %vm484, %v486, %v488
        %v492 = vadd.f32 %v472, %v487
        %v493 = vadd.f32 %v473, %v489
        %v494 = vlaneseq
        %v495 = vshrl.u32 %v494, 7
        %v496 = vsub.s32 3, %v495
        %v497 = vrot.slane %v424, %v496
        %v498 = vmul.f32 %v497, 0.0
        %v499 = vmul.f32 %v437, %v497
        %v500 = vmul.f32 %v433, %v497
        %vm504 = vcmask 1044480
        %v505 = vrot.slane %v498, 3
        %v506 = vrot.slane %v499, 3
        %v507 = vsel %vm504, %v505, %v506
        %v508 = vrot.slane %v500, 3
        %v509 = vsel %vm504, %v506, %v508
        %v512 = vadd.f32 %v492, %v507
        %v513 = vadd.f32 %v493, %v509
        %v514 = vlaneseq
        %v515 = vshrl.u32 %v514, 7
        %v516 = vsub.s32 4, %v515
        %v517 = vrot.slane %v424, %v516
        %v518 = vmul.f32 %v517, 0.0
        %v519 = vmul.f32 %v437, %v517
        %v520 = vmul.f32 %v433, %v517
        %vm524 = vcmask 1043456
        %v525 = vrot.slane %v518, 4
        %v526 = vrot.slane %v519, 4
        %v527 = vsel %vm524, %v525, %v526
        %v528 = vrot.slane %v520, 4
        %v529 = vsel %vm524, %v526, %v528
        %v532 = vadd.f32 %v512, %v527
        %v533 = vadd.f32 %v513, %v529
        %v534 = vlaneseq
        %v535 = vshrl.u32 %v534, 7
        %v536 = vsub.s32 5, %v535
        %v537 = vrot.slane %v424, %v536
        %v538 = vmul.f32 %v537, 0.0
        %v539 = vmul.f32 %v437, %v537
        %v540 = vmul.f32 %v433, %v537
        %vm544 = vcmask 1042432
        %v545 = vrot.slane %v538, 5
        %v546 = vrot.slane %v539, 5
        %v547 = vsel %vm544, %v545, %v546
        %v548 = vrot.slane %v540, 5
        %v549 = vsel %vm544, %v546, %v548
        %v552 = vadd.f32 %v532, %v547
        %v553 = vadd.f32 %v533, %v549
        %v554 = vlaneseq
        %v555 = vshrl.u32 %v554, 7
        %v556 = vsub.s32 6, %v555
        %v557 = vrot.slane %v424, %v556
        %v558 = vmul.f32 %v557, 0.0
        %v559 = vmul.f32 %v437, %v557
        %v560 = vmul.f32 %v433, %v557
        %vm564 = vcmask 1041408
        %v565 = vrot.slane %v558, 6
        %v566 = vrot.slane %v559, 6
        %v567 = vsel %vm564, %v565, %v566
        %v568 = vrot.slane %v560, 6
        %v569 = vsel %vm564, %v566, %v568
        %v572 = vadd.f32 %v552, %v567
        %v573 = vadd.f32 %v553, %v569
        %v574 = vlaneseq
        %v575 = vshrl.u32 %v574, 7
        %v576 = vsub.s32 7, %v575
        %v577 = vrot.slane %v424, %v576
        %v578 = vmul.f32 %v577, 0.0
        %v579 = vmul.f32 %v437, %v577
        %v580 = vmul.f32 %v433, %v577
        %vm584 = vcmask 1040384
        %v585 = vrot.slane %v578, 7
        %v586 = vrot.slane %v579, 7
        %v587 = vsel %vm584, %v585, %v586
        %v588 = vrot.slane %v580, 7
        %v589 = vsel %vm584, %v586, %v588
        %v592 = vadd.f32 %v572, %v587
        %v593 = vadd.f32 %v573, %v589
        %v594 = vlaneseq
        %v595 = vshrl.u32 %v594, 7
        %v596 = vsub.s32 0, %v595
        %v597 = vrot.slane %v425, %v596
        %v598 = vmul.f32 %v437, %v597
        %v599 = vmul.f32 %v433, %v597
        %v600 = vadd.f32 %v592, %v598
        %v601 = vadd.f32 %v593, %v599
        %v602 = vlaneseq
        %v603 = vshrl.u32 %v602, 7
        %v604 = vsub.s32 1, %v603
        %v605 = vrot.slane %v425, %v604
        %v606 = vmul.f32 %v437, %v605
        %v607 = vmul.f32 %v433, %v605
        %v608 = vmul.f32 %v438, %v605
        %v612 = vrot.slane %v606, 1
        %v613 = vrot.slane %v607, 1
        %v614 = vsel %vm430, %v612, %v613
        %v615 = vrot.slane %v608, 1
        %v616 = vsel %vm430, %v613, %v615
        %v619 = vadd.f32 %v600, %v614
        %v620 = vadd.f32 %v601, %v616
        %v621 = vlaneseq
        %v622 = vshrl.u32 %v621, 7
        %v623 = vsub.s32 2, %v622
        %v624 = vrot.slane %v425, %v623
        %v625 = vmul.f32 %v437, %v624
        %v626 = vmul.f32 %v433, %v624
        %v627 = vmul.f32 %v438, %v624
        %v631 = vrot.slane %v625, 2
        %v632 = vrot.slane %v626, 2
        %v633 = vsel %vm484, %v631, %v632
        %v634 = vrot.slane %v627, 2
        %v635 = vsel %vm484, %v632, %v634
        %v638 = vadd.f32 %v619, %v633
        %v639 = vadd.f32 %v620, %v635
        %v640 = vlaneseq
        %v641 = vshrl.u32 %v640, 7
        %v642 = vsub.s32 3, %v641
        %v643 = vrot.slane %v425, %v642
        %v644 = vmul.f32 %v437, %v643
        %v645 = vmul.f32 %v433, %v643
        %v646 = vmul.f32 %v438, %v643
        %v650 = vrot.slane %v644, 3
        %v651 = vrot.slane %v645, 3
        %v652 = vsel %vm504, %v650, %v651
        %v653 = vrot.slane %v646, 3
        %v654 = vsel %vm504, %v651, %v653
        %v657 = vadd.f32 %v638, %v652
        %v658 = vadd.f32 %v639, %v654
        %v659 = vlaneseq
        %v660 = vshrl.u32 %v659, 7
        %v661 = vsub.s32 4, %v660
        %v662 = vrot.slane %v425, %v661
        %v663 = vmul.f32 %v437, %v662
        %v664 = vmul.f32 %v433, %v662
        %v665 = vmul.f32 %v438, %v662
        %v669 = vrot.slane %v663, 4
        %v670 = vrot.slane %v664, 4
        %v671 = vsel %vm524, %v669, %v670
        %v672 = vrot.slane %v665, 4
        %v673 = vsel %vm524, %v670, %v672
        %v676 = vadd.f32 %v657, %v671
        %v677 = vadd.f32 %v658, %v673
        %v678 = vlaneseq
        %v679 = vshrl.u32 %v678, 7
        %v680 = vsub.s32 5, %v679
        %v681 = vrot.slane %v425, %v680
        %v682 = vmul.f32 %v437, %v681
        %v683 = vmul.f32 %v433, %v681
        %v684 = vmul.f32 %v438, %v681
        %v688 = vrot.slane %v682, 5
        %v689 = vrot.slane %v683, 5
        %v690 = vsel %vm544, %v688, %v689
        %v691 = vrot.slane %v684, 5
        %v692 = vsel %vm544, %v689, %v691
        %v695 = vadd.f32 %v676, %v690
        %v696 = vadd.f32 %v677, %v692
        %v697 = vlaneseq
        %v698 = vshrl.u32 %v697, 7
        %v699 = vsub.s32 6, %v698
        %v700 = vrot.slane %v425, %v699
        %v701 = vmul.f32 %v437, %v700
        %v702 = vmul.f32 %v433, %v700
        %v703 = vmul.f32 %v438, %v700
        %v707 = vrot.slane %v701, 6
        %v708 = vrot.slane %v702, 6
        %v709 = vsel %vm564, %v707, %v708
        %v710 = vrot.slane %v703, 6
        %v711 = vsel %vm564, %v708, %v710
        %v714 = vadd.f32 %v695, %v709
        %v715 = vadd.f32 %v696, %v711
        %v716 = vlaneseq
        %v717 = vshrl.u32 %v716, 7
        %v718 = vsub.s32 7, %v717
        %v719 = vrot.slane %v425, %v718
        %v720 = vmul.f32 %v437, %v719
        %v721 = vmul.f32 %v433, %v719
        %v722 = vmul.f32 %v438, %v719
        %v726 = vrot.slane %v720, 7
        %v727 = vrot.slane %v721, 7
        %v728 = vsel %vm584, %v726, %v727
        %v729 = vrot.slane %v722, 7
        %v730 = vsel %vm584, %v727, %v729
        %v733 = vadd.f32 %v714, %v728
        %v734 = vadd.f32 %v715, %v730
        %v735 = vlaneseq
        %v736 = vshrl.u32 %v735, 7
        %v737 = vsub.s32 0, %v736
        %v738 = vrot.slane %v426, %v737
        %v739 = vmul.f32 %v433, %v738
        %v740 = vmul.f32 %v438, %v738
        %v741 = vadd.f32 %v733, %v739
        %v742 = vadd.f32 %v734, %v740
        %v743 = vlaneseq
        %v744 = vshrl.u32 %v743, 7
        %v745 = vsub.s32 1, %v744
        %v746 = vrot.slane %v426, %v745
        %v747 = vmul.f32 %v433, %v746
        %v748 = vmul.f32 %v438, %v746
        %v749 = vmul.f32 %v746, 0.0
        %v753 = vrot.slane %v747, 1
        %v754 = vrot.slane %v748, 1
        %v755 = vsel %vm430, %v753, %v754
        %v756 = vrot.slane %v749, 1
        %v757 = vsel %vm430, %v754, %v756
        %v760 = vadd.f32 %v741, %v755
        %v761 = vadd.f32 %v742, %v757
        %v762 = vlaneseq
        %v763 = vshrl.u32 %v762, 7
        %v764 = vsub.s32 2, %v763
        %v765 = vrot.slane %v426, %v764
        %v766 = vmul.f32 %v433, %v765
        %v767 = vmul.f32 %v438, %v765
        %v768 = vmul.f32 %v765, 0.0
        %v772 = vrot.slane %v766, 2
        %v773 = vrot.slane %v767, 2
        %v774 = vsel %vm484, %v772, %v773
        %v775 = vrot.slane %v768, 2
        %v776 = vsel %vm484, %v773, %v775
        %v779 = vadd.f32 %v760, %v774
        %v780 = vadd.f32 %v761, %v776
        %v781 = vlaneseq
        %v782 = vshrl.u32 %v781, 7
        %v783 = vsub.s32 3, %v782
        %v784 = vrot.slane %v426, %v783
        %v785 = vmul.f32 %v433, %v784
        %v786 = vmul.f32 %v438, %v784
        %v787 = vmul.f32 %v784, 0.0
        %v791 = vrot.slane %v785, 3
        %v792 = vrot.slane %v786, 3
        %v793 = vsel %vm504, %v791, %v792
        %v794 = vrot.slane %v787, 3
        %v795 = vsel %vm504, %v792, %v794
        %v798 = vadd.f32 %v779, %v793
        %v799 = vadd.f32 %v780, %v795
        %v800 = vlaneseq
        %v801 = vshrl.u32 %v800, 7
        %v802 = vsub.s32 4, %v801
        %v803 = vrot.slane %v426, %v802
        %v804 = vmul.f32 %v433, %v803
        %v805 = vmul.f32 %v438, %v803
        %v806 = vmul.f32 %v803, 0.0
        %v810 = vrot.slane %v804, 4
        %v811 = vrot.slane %v805, 4
        %v812 = vsel %vm524, %v810, %v811
        %v813 = vrot.slane %v806, 4
        %v814 = vsel %vm524, %v811, %v813
        %v817 = vadd.f32 %v798, %v812
        %v818 = vadd.f32 %v799, %v814
        %v819 = vlaneseq
        %v820 = vshrl.u32 %v819, 7
        %v821 = vsub.s32 5, %v820
        %v822 = vrot.slane %v426, %v821
        %v823 = vmul.f32 %v433, %v822
        %v824 = vmul.f32 %v438, %v822
        %v825 = vmul.f32 %v822, 0.0
        %v829 = vrot.slane %v823, 5
        %v830 = vrot.slane %v824, 5
        %v831 = vsel %vm544, %v829, %v830
        %v832 = vrot.slane %v825, 5
        %v833 = vsel %vm544, %v830, %v832
        %v836 = vadd.f32 %v817, %v831
        %v837 = vadd.f32 %v818, %v833
        %v838 = vlaneseq
        %v839 = vshrl.u32 %v838, 7
        %v840 = vsub.s32 6, %v839
        %v841 = vrot.slane %v426, %v840
        %v842 = vmul.f32 %v433, %v841
        %v843 = vmul.f32 %v438, %v841
        %v844 = vmul.f32 %v841, 0.0
        %v848 = vrot.slane %v842, 6
        %v849 = vrot.slane %v843, 6
        %v850 = vsel %vm564, %v848, %v849
        %v851 = vrot.slane %v844, 6
        %v852 = vsel %vm564, %v849, %v851
        %v855 = vadd.f32 %v836, %v850
        %v856 = vadd.f32 %v837, %v852
        %v857 = vlaneseq
        %v858 = vshrl.u32 %v857, 7
        %v859 = vsub.s32 7, %v858
        %v860 = vrot.slane %v426, %v859
        %v861 = vmul.f32 %v433, %v860
        %v862 = vmul.f32 %v438, %v860
        %v863 = vmul.f32 %v860, 0.0
        %v867 = vrot.slane %v861, 7
        %v868 = vrot.slane %v862, 7
        %v869 = vsel %vm584, %v867, %v868
        %v870 = vrot.slane %v863, 7
        %v871 = vsel %vm584, %v868, %v870
        %v874 = vadd.f32 %v855, %v869
        %v875 = vadd.f32 %v856, %v871
        %v876 = vlaneseq
        %v877 = vshrl.u32 %v876, 7
        %v878 = vsub.s32 0, %v877
        %v879 = vrot.slane %v427, %v878
        %v880 = vmul.f32 %v438, %v879
        %v881 = vmul.f32 %v879, 0.0
        %v882 = vadd.f32 %v874, %v880
        %v883 = vadd.f32 %v875, %v881
        %v884 = vlaneseq
        %v885 = vshrl.u32 %v884, 7
        %v886 = vsub.s32 1, %v885
        %v887 = vrot.slane %v427, %v886
        %v888 = vmul.f32 %v438, %v887
        %v889 = vmul.f32 %v887, 0.0
        %v892 = vrot.slane %v888, 1
        %v893 = vrot.slane %v889, 1
        %v894 = vsel %vm430, %v892, %v893
        %v895 = vsel %vm430, %v893, %v893
        %v898 = vadd.f32 %v882, %v894
        %v899 = vadd.f32 %v883, %v895
        %v900 = vlaneseq
        %v901 = vshrl.u32 %v900, 7
        %v902 = vsub.s32 2, %v901
        %v903 = vrot.slane %v427, %v902
        %v904 = vmul.f32 %v438, %v903
        %v905 = vmul.f32 %v903, 0.0
        %v908 = vrot.slane %v904, 2
        %v909 = vrot.slane %v905, 2
        %v910 = vsel %vm484, %v908, %v909
        %v911 = vsel %vm484, %v909, %v909
        %v914 = vadd.f32 %v898, %v910
        %v915 = vadd.f32 %v899, %v911
        %v916 = vlaneseq
        %v917 = vshrl.u32 %v916, 7
        %v918 = vsub.s32 3, %v917
        %v919 = vrot.slane %v427, %v918
        %v920 = vmul.f32 %v438, %v919
        %v921 = vmul.f32 %v919, 0.0
        %v924 = vrot.slane %v920, 3
        %v925 = vrot.slane %v921, 3
        %v926 = vsel %vm504, %v924, %v925
        %v927 = vsel %vm504, %v925, %v925
        %v930 = vadd.f32 %v914, %v926
        %v931 = vadd.f32 %v915, %v927
        %v932 = vlaneseq
        %v933 = vshrl.u32 %v932, 7
        %v934 = vsub.s32 4, %v933
        %v935 = vrot.slane %v427, %v934
        %v936 = vmul.f32 %v438, %v935
        %v937 = vmul.f32 %v935, 0.0
        %v940 = vrot.slane %v936, 4
        %v941 = vrot.slane %v937, 4
        %v942 = vsel %vm524, %v940, %v941
        %v943 = vsel %vm524, %v941, %v941
        %v946 = vadd.f32 %v930, %v942
        %v947 = vadd.f32 %v931, %v943
        %v948 = vlaneseq
        %v949 = vshrl.u32 %v948, 7
        %v950 = vsub.s32 5, %v949
        %v951 = vrot.slane %v427, %v950
        %v952 = vmul.f32 %v438, %v951
        %v953 = vmul.f32 %v951, 0.0
        %v956 = vrot.slane %v952, 5
        %v957 = vrot.slane %v953, 5
        %v958 = vsel %vm544, %v956, %v957
        %v959 = vsel %vm544, %v957, %v957
        %v962 = vadd.f32 %v946, %v958
        %v963 = vadd.f32 %v947, %v959
        %v964 = vlaneseq
        %v965 = vshrl.u32 %v964, 7
        %v966 = vsub.s32 6, %v965
        %v967 = vrot.slane %v427, %v966
        %v968 = vmul.f32 %v438, %v967
        %v969 = vmul.f32 %v967, 0.0
        %v972 = vrot.slane %v968, 6
        %v973 = vrot.slane %v969, 6
        %v974 = vsel %vm564, %v972, %v973
        %v975 = vsel %vm564, %v973, %v973
        %v978 = vadd.f32 %v962, %v974
        %v979 = vadd.f32 %v963, %v975
        %v980 = vxor.u32 %v978, 2147483648
        %v981 = vxor.u32 %v979, 2147483648
        %v982 = vmul.f32 %v980, 1.442695
        %v983 = vpow.pop %v982
        %v984 = vmul.f32 %v981, 1.442695
        %v985 = vpow.pop %v984
        %v986 = vadd.f32 %v983, 1.0
        %v987 = vadd.f32 %v985, 1.0
        %v988 = vrcp.pop %v986
        %v989 = vmul.f32 1.0, %v988
        %v990 = vrcp.pop %v987
        %v991 = vmul.f32 1.0, %v990
        %v992 = vmul.f32 %v978, %v989
        %v993 = vmul.f32 %v979, %v991
        %v994 = vld [vmem:[%s5] sm:$0xff]
        %v995 = vld [vmem:[%s5 + $0x8] sm:$0xff]
        %v996 = vld [vmem:[%s5 + $0x10] sm:$0xff]
        %v997 = vld [vmem:[%s5 + $0x18] sm:$0xff]
        %v998 = vld [vmem:[%s5 + $0x20] sm:$0xff]
        %v999 = vld [vmem:[%s5 + $0x28] sm:$0xff]
        %v1000 = vld [vmem:[%s5 + $0x30] sm:$0xff]
        %v1001 = vld [vmem:[%s5 + $0x38] sm:$0xff]
        %v1002 = vld [vmem:[%s6] sm:$0x1]
        %v1004 = vlaneseq
        %v1005 = vshrl.u32 %v1004, 7
        %v1006 = vsub.s32 0, %v1005
        %v1007 = vrot.slane %v1002, %v1006
        %vm1009 = vcmask 523264
        %v1011 = vsel %vm1009, %v992, 0
        %v1014 = vsel %vm1009, %v993, 0
        %1016 = vmatprep.subr.mxu0 0.0
        %1017 = vmatpush1.msra.mxu0 0.0
        %1018 = vmatprep.subr.mxu0 0.0
        %1019 = vmatpush1.msra.mxu0 0.0
        %1020 = vmatprep.subr.mxu0 0.0
        %1021 = vmatpush1.msra.mxu0 0.0
        %1022 = vmatprep.subr.mxu0 0.0
        %1023 = vmatpush1.msra.mxu0 0.0
        %1024 = vmatprep.subr.mxu0 0.0
        %1025 = vmatpush1.msra.mxu0 0.0
        %1026 = vmatprep.subr.mxu0 0.0
        %1027 = vmatpush1.msra.mxu0 0.0
        %1028 = vmatprep.subr.mxu0 0.0
        %1029 = vmatpush1.msra.mxu0 0.0
        %1030 = vmatprep.subr.mxu0 0.0
        %1031 = vmatpush1.msra.mxu0 0.0
        %1032 = vmatprep.subr.mxu0 0.0
        %1033 = vmatpush1.msra.mxu0 %v1001
        %1034 = vmatprep.subr.mxu0 0.0
        %1035 = vmatpush1.msra.mxu0 %v1000
        %1036 = vmatprep.subr.mxu0 0.0
        %1037 = vmatpush1.msra.mxu0 %v999
        %1038 = vmatprep.subr.mxu0 0.0
        %1039 = vmatpush1.msra.mxu0 %v998
        %1040 = vmatprep.subr.mxu0 0.0
        %1041 = vmatpush1.msra.mxu0 %v997
        %1042 = vmatprep.subr.mxu0 0.0
        %1043 = vmatpush1.msra.mxu0 %v996
        %1044 = vmatprep.subr.mxu0 0.0
        %1045 = vmatpush1.msra.mxu0 %v995
        %1046 = vmatprep.subr.mxu0 0.0
        %1047 = vmatpush1.msra.mxu0 %v994
        %1048 = vmatprep.subr.mxu0 0.0
        %1049 = vmatpush2.msra.mxu0 0.0
        %1050 = vmatprep.subr.mxu0 0.0
        %1051 = vmatpush2.msra.mxu0 0.0
        %1052 = vmatprep.subr.mxu0 0.0
        %1053 = vmatpush2.msra.mxu0 0.0
        %1054 = vmatprep.subr.mxu0 0.0
        %1055 = vmatpush2.msra.mxu0 0.0
        %1056 = vmatprep.subr.mxu0 0.0
        %1057 = vmatpush2.msra.mxu0 0.0
        %1058 = vmatprep.subr.mxu0 0.0
        %1059 = vmatpush2.msra.mxu0 0.0
        %1060 = vmatprep.subr.mxu0 0.0
        %1061 = vmatpush2.msra.mxu0 0.0
        %1062 = vmatprep.subr.mxu0 0.0
        %1063 = vmatpush2.msra.mxu0 0.0
        %1064 = vmatprep.subr.mxu0 0.0
        %1065 = vmatpush2.msra.mxu0 0.0
        %1066 = vmatprep.subr.mxu0 0.0
        %1067 = vmatpush2.msra.mxu0 0.0
        %1068 = vmatprep.subr.mxu0 0.0
        %1069 = vmatpush2.msra.mxu0 0.0
        %1070 = vmatprep.subr.mxu0 0.0
        %1071 = vmatpush2.msra.mxu0 0.0
        %1072 = vmatprep.subr.mxu0 0.0
        %1073 = vmatpush2.msra.mxu0 0.0
        %1074 = vmatprep.subr.mxu0 0.0
        %1075 = vmatpush2.msra.mxu0 0.0
        %1076 = vmatprep.subr.mxu0 0.0
        %1077 = vmatpush2.msra.mxu0 0.0
        %1078 = vmatprep.subr.mxu0 0.0
        %1079 = vmatpush2.msra.mxu0 0.0
        %1080 = vmatprep.mubr.f32.mxu0 0.0
        %1081 = vmatmul.mubr.f32.gmra.mxu0 %v1011
        %v1082 = vpop.f32.mrf.mxu0
        %v1083 = vadd.f32 %v1007, %v1082
        %v1084 = vpop.f32.mrf.mxu0
        %1085 = vmatprep.mubr.f32.mxu0 0.0
        %1086 = vmatmul.mubr.f32.gmra.mxu0 %v1014
        %v1087 = vpop.f32.mrf.mxu0
        %v1088 = vadd.f32 %v1007, %v1087
        %v1089 = vpop.f32.mrf.mxu0
        %1090 = vdwg.mxu0
        %1091 = vst.msk [vmem:[%s272] sm:$0xff] %vm282, %v1083
        %1092 = vst.msk [vmem:[%s272 + $0x8] sm:$0xff] %vm282, %v1088
        %s1093 = sand.u32 %s181, 1
        %s1094 = scalar_lea.sflag [#allocation3], %s1093
        %s1095 = sand.u32 %s181, 1
        %s1096 = smul.addr %s1095, 16
        %s1097 = scalar_lea.vmem [#allocation2], %s1096
        // Predicated region
        $region49: #{tpu_custom_call.1} parent=47 // pred_check
          %p1098 = pneg %p191
        $region50: #{tpu_custom_call.1} parent=47 // pred_check_branch
          %1100 = sbr.rel (%p1098) target = $region52
        $region51: #{tpu_custom_call.1} parent=47 // pred_region
          %s1101 = smul.u32 2, %s21
          %s1103 = ssub.s32 256, 256
          %1104 = vsyncadd %s1094, %s1103
          %s1105 = smul.addr %s1101, 128
          %s1106 = scalar_lea.hbm %s7, %s1105
          %s1107 = sshll.u32 %s1097, 4
          %s1108 = int_to_ptr.vmem [resolvable:$true] %s1107
          %1113 = dma.vmem_to_hbm [thread:$0]  %s1108, 256, %s1106, %s1094, 128, 128, 8
        $region52: #{tpu_custom_call.1} parent=47 // pred_fallthru
          _
      $region48: #{tpu_custom_call.1} parent=5 // pred_fallthru
        _
      %p1114 = scmp.le.s32.totalorder 2, %s16
      // Predicated region
      $region53: #{tpu_custom_call.1} parent=5 // pred_check
        %p1115 = pneg %p1114
      $region54: #{tpu_custom_call.1} parent=5 // pred_check_branch
        %1117 = sbr.rel (%p1115) target = $region56
      $region55: #{tpu_custom_call.1} parent=5 // pred_region
        %s1118 = ssub.s32 %s16, 2
        // Predicated region
        $region57: #{tpu_custom_call.1} parent=55 // pred_check
          %p1119 = pneg %p197
        $region58: #{tpu_custom_call.1} parent=55 // pred_check_branch
          %1121 = sbr.rel (%p1119) target = $region60
        $region59: #{tpu_custom_call.1} parent=55 // pred_region
          %s1122 = sand.u32 %s182, 1
          %s1123 = scalar_lea.sflag [#allocation3], %s1122
          %s1124 = sand.u32 %s182, 1
          %s1125 = smul.addr %s1124, 16
          %s1126 = scalar_lea.vmem [#allocation2], %s1125
          %1127 = dma.done %s1123, 256
        $region60: #{tpu_custom_call.1} parent=55 // pred_fallthru
          _
      $region56: #{tpu_custom_call.1} parent=5 // pred_fallthru
        _
    $region6: #{tpu_custom_call.1} parent=1 // loop_footer
      %s20 = sadd.s32 1, %s16
    $region7: #{tpu_custom_call.1} parent=1 // loop_footer_branch
      %15 = sbr.rel target = $region3
    $region8: #{tpu_custom_call.1} parent=1 // loop_exit
      _
    %1128 = vsyncpa [#allocation3], 1
    %s1129 = scalar_lea.sflag [#allocation3], 1
    %1130 = vsyncpa %s1129, 1

</llo_original>
